<compile_context>
chip_gen: v6e
topology: v6e:2x2x1
jax: 0.10.0
libtpu: 0.0.40
codegen_flags: <defaults>
</compile_context>

<pallas_src>
import jax
import jax.numpy as jnp
from jax.experimental import pallas as pl
from jax.experimental.pallas import tpu as pltpu

N_FEATURES = 2                      # matches `n = 2` in the PyTorch script
_SUBLANES = 8                       # f32 sublanes per vreg
_MAX_TILE_LANES = 128 * 1024        # lanes per grid step (~12 MiB moved/step)
_VMEM_LIMIT_BYTES = 32 * 1024 * 1024


def _round_up(a, b):
    return (a + b - 1) // b * b


def _linear_kernel(x_ref, w_ref, o_ref):
    # x_ref: (16, TB) f32 VMEM tile; rows 0..7 hold feature-0 values,
    #        rows 8..15 hold feature-1 values (batch is sublane+lane dense).
    # w_ref: (2,) f32 scalars in SMEM.
    # o_ref: (8, TB) f32 VMEM tile (dense output vregs, unmasked vst except
    #        for the masked partial last block).
    x0 = x_ref[0:_SUBLANES, :]
    x1 = x_ref[_SUBLANES:2 * _SUBLANES, :]
    o_ref[...] = x0 * w_ref[0] + x1 * w_ref[1]


def linear_forward(x, w, *, max_tile_lanes=_MAX_TILE_LANES):
    """x: (B, 2) float32, w: (2, 1) float32 -> (B, 1) float32 (== x @ w)."""
    B, N = x.shape
    assert N == N_FEATURES and w.shape == (N_FEATURES, 1)

    # Tiny or ragged batches: kernel launch + layout plumbing dwarfs the work,
    # and the sublane-dense view needs B % 8 == 0.  Plain XLA dot is faster.
    if B < _SUBLANES * 128 or B % _SUBLANES != 0:
        return x @ w

    cols = B // _SUBLANES           # lane extent of the (16, cols) view

    # Feature-major, sublane-dense view: (B, 2) -> (2, B) -> (16, B/8).
    # TODO(synk): accept x feature-major from the producer to remove this
    # transpose (it costs one extra HBM pass over x before the kernel).
    x16 = jnp.transpose(x).reshape(2 * _SUBLANES, cols)
    w_smem = jnp.reshape(w, (N_FEATURES,))

    # Tile as large as the (all-chip-safe) VMEM budget allows, but keep at
    # least ~2 grid steps so megacore / dual-TC chips can split the batch.
    tb = min(max_tile_lanes, _round_up(pl.cdiv(cols, 2), 128))
    grid = pl.cdiv(cols, tb)        # partial last block is masked by Pallas

    y8 = pl.pallas_call(
        _linear_kernel,
        out_shape=jax.ShapeDtypeStruct((_SUBLANES, cols), jnp.float32),
        grid_spec=pltpu.PrefetchScalarGridSpec(
            num_scalar_prefetch=0,
            grid=(grid,),
            in_specs=[
                pl.BlockSpec((2 * _SUBLANES, tb), lambda i: (0, i)),
                pl.BlockSpec(memory_space=pltpu.MemorySpace.SMEM),
            ],
            out_specs=pl.BlockSpec((_SUBLANES, tb), lambda i: (0, i)),
        ),
        compiler_params=pltpu.CompilerParams(
            dimension_semantics=("parallel",),
            vmem_limit_bytes=_VMEM_LIMIT_BYTES,
        ),
    )(x16, w_smem)

    # Row-major reshape restores batch order; no transpose / slice copy.
    return jnp.reshape(y8, (B, 1))


class Model:
    """JAX mirror of the PyTorch Model: a single bias-free Linear(n, 1)."""

    def __init__(self, key):
        # PyTorch nn.Linear init: U(-1/sqrt(in_features), 1/sqrt(in_features))
        bound = 1.0 / jnp.sqrt(jnp.float32(N_FEATURES))
        # Stored as (N, 1) so forward is x @ w (== x @ W.T with W: (1, N)).
        self.w = jax.random.uniform(
            key, (N_FEATURES, 1), dtype=jnp.float32, minval=-bound, maxval=bound
        )
        self._fwd = jax.jit(linear_forward)

    def forward(self, x):
        return self._fwd(x, self.w)


if __name__ == "__main__":
    key = jax.random.PRNGKey(0)
    k_w, k_x = jax.random.split(key)

    model = Model(k_w)

    # Small batches that still exercise the Pallas kernel:
    #   4096 -> cols=512, tb=256, grid=2 (fully lane-aligned blocks)
    #   5120 -> cols=640, tb=384, grid=2 (masked partial last block)
    for batch in (4096, 5120):
        x = jax.random.normal(
            jax.random.fold_in(k_x, batch), (batch, N_FEATURES), dtype=jnp.float32
        )
        y = jax.block_until_ready(model.forward(x))

        y_ref = x @ model.w
        assert y.shape == (batch, 1)
        assert jnp.allclose(y, y_ref, atol=1e-5, rtol=1e-5)

    print("KERNEL_OK")
</pallas_src>

<mosaic_0001>
module attributes {stable_mosaic.version = 11 : i64} {
  func.func @_linear_kernel(%arg0: i32, %arg1: memref<16x256xf32, #tpu.memory_space<vmem>>, %arg2: memref<2xf32, #tpu.memory_space<smem>>, %arg3: memref<8x256xf32, #tpu.memory_space<vmem>>) attributes {dimension_semantics = [#tpu.dimension_semantics<parallel>], iteration_bounds = array<i64: 2>, scalar_prefetch = 0 : i64, scratch_operands = 0 : i64, tpu.core_type = #tpu.core_type<tc>, window_params = [{transform_indices = @transform_0, window_bounds = array<i64: 16, 256>}, {transform_indices = @transform_1, window_bounds = array<i64: 2>}, {transform_indices = @transform_2, window_bounds = array<i64: 8, 256>}]} {
    %c0 = arith.constant 0 : index
    %c0_0 = arith.constant 0 : index
    %0 = vector.load %arg1[%c0, %c0_0] : memref<16x256xf32, #tpu.memory_space<vmem>>, vector<8x256xf32>
    %c8 = arith.constant 8 : index
    %c0_1 = arith.constant 0 : index
    %1 = vector.load %arg1[%c8, %c0_1] : memref<16x256xf32, #tpu.memory_space<vmem>>, vector<8x256xf32>
    %c0_2 = arith.constant 0 : index
    %2 = memref.load %arg2[%c0_2] : memref<2xf32, #tpu.memory_space<smem>>
    %3 = vector.broadcast %2 : f32 to vector<8x256xf32>
    %4 = arith.mulf %0, %3 : vector<8x256xf32>
    %c1 = arith.constant 1 : index
    %5 = memref.load %arg2[%c1] : memref<2xf32, #tpu.memory_space<smem>>
    %6 = vector.broadcast %5 : f32 to vector<8x256xf32>
    %7 = arith.mulf %1, %6 : vector<8x256xf32>
    %8 = arith.addf %4, %7 : vector<8x256xf32>
    %c0_3 = arith.constant 0 : index
    %c0_4 = arith.constant 0 : index
    %9 = vector.load %arg3[%c0_3, %c0_4] : memref<8x256xf32, #tpu.memory_space<vmem>>, vector<8x256xf32>
    tpu.vector_store %arg3[%c0_3, %c0_4], %8 {strides = array<i32>} : memref<8x256xf32, #tpu.memory_space<vmem>>, vector<8x256xf32>,
    return
  }
  func.func @transform_0(%arg0: i32) -> (i32, i32) {
    %c0_i32 = arith.constant 0 : i32
    %c0_i32_0 = arith.constant 0 : i32
    return %c0_i32, %arg0 : i32, i32
  }
  func.func @transform_1(%arg0: i32) -> i32 {
    %c0_i32 = arith.constant 0 : i32
    %c0_i32_0 = arith.constant 0 : i32
    return %c0_i32 : i32
  }
  func.func @transform_2(%arg0: i32) -> (i32, i32) {
    %c0_i32 = arith.constant 0 : i32
    %c0_i32_0 = arith.constant 0 : i32
    return %c0_i32, %arg0 : i32, i32
  }
}

</mosaic_0001>

<llo_original>
// kernel: linear_forward.1
$region0: #{linear_forward.1}
  #allocation0 [shape = 'u32[]', space=smem, size = 0x4, offset = 0x4, fixed_abs, tag = 'smem constant byte address 0x4 - core index']
  #allocation1 [shape = 'u32[144,128]{1,0:T(1,128)}', space=vmem, size = 0x12000, scoped, tag = 'internal scratch']
  %s0 = inlined_call_operand.vmem [shape: f32[16,512], index: 0, kind: input, shape index: {}]
  %s1 = inlined_call_operand.vmem [shape: f32[2], index: 1, kind: input, shape index: {}]
  %s2 = inlined_call_operand.vmem [shape: f32[8,512], index: 2, kind: output, shape index: {}]
  %s3 = sld [smem:[#allocation0]]
  $region68: #{linear_forward.1} parent=0
    _
  %s5 = ssub.s32 1, %s3
  %s6 = scalar_select 0, %s5, %s3
  $region1: #{linear_forward.1} parent=0
    #allocation2 [shape = 'u8[32768]{0}', space=vmem, size = 0x8000, scoped, tag = 'input window, operand 0']
    #allocation3 [shape = 'u8[512]{0}', space=smem, size = 0x200, scoped, tag = 'input window, operand 1, single buffered']
    #allocation4 [shape = 's32[2]{0}', space=sflag, size = 0x8, scoped, tag = 'scoped memory for linear_forward.1']
    %7 = vsyncpa [#allocation4], 0
    loop: start=0, step=1, limit=4
    $region2: #{linear_forward.1} parent=1 // loop_pre_header
      _
    $region3: #{linear_forward.1} parent=1 // loop_header
      %s9 = sphi 0, %s13
      %p10 = scmp.ge.s32.totalorder %s9, 4
      %s19 = sphi 0, %s21
      %s22 = sphi 0, %s19
      %s23 = sphi 0, %s22
      %s39 = sphi 0, %s23
      %s43 = sphi 0, %s43
      %s45 = sphi 0, %s43
      %s46 = sphi 0, %s45
      %s60 = sphi 0, %s46
      %s66 = sphi 0, %s68
      %s69 = sphi 0, %s66
      %s70 = sphi 0, %s69
      %s86 = sphi 0, %s70
    $region4: #{linear_forward.1} parent=1 // loop_header_branch
      %12 = sbr.rel (%p10) target = $region8
    $region5: #{linear_forward.1} parent=1 // loop_body
      %s14 = ssub.s32 %s9, 1
      %s15 = ssub.s32 %s9, 2
      %s16 = sadd.s32 %s9, 1
      %s17 = ssub.s32 %s9, %s16
      %p18 = scmp.eq.s32.totalorder %s17, 0
      %s20 = sadd.s32 %s19, 1
      %s21 = scalar_select %p18, %s19, %s20
      %p24 = pneg %p18
      %p25 = scmp.eq.s32.totalorder %s9, 1
      %p26 = por %p24, %p25
      %p27 = scmp.ne.s32.totalorder %s19, %s22
      %p28 = scmp.eq.s32.totalorder %s9, 0
      %p29 = por %p27, %p28
      %p30 = scmp.ne.s32.totalorder %s19, %s22
      %p31 = scmp.eq.s32.totalorder %s14, 1
      %p32 = por %p30, %p31
      %p33 = scmp.ne.s32.totalorder %s22, %s23
      %p34 = scmp.eq.s32.totalorder %s14, 0
      %p35 = por %p33, %p34
      %p36 = scmp.ne.s32.totalorder %s22, %s23
      %p37 = scmp.eq.s32.totalorder %s15, 1
      %p38 = por %p36, %p37
      %p40 = scmp.ne.s32.totalorder %s23, %s39
      %p41 = scmp.eq.s32.totalorder %s15, 0
      %p42 = por %p40, %p41
      %s44 = sadd.s32 %s43, 1
      %p47 = scmp.eq.s32.totalorder %s9, 1
      %p48 = scmp.ne.s32.totalorder %s43, %s45
      %p49 = scmp.eq.s32.totalorder %s9, 0
      %p50 = por %p48, %p49
      %p51 = scmp.ne.s32.totalorder %s43, %s45
      %p52 = scmp.eq.s32.totalorder %s14, 1
      %p53 = por %p51, %p52
      %p54 = scmp.ne.s32.totalorder %s45, %s46
      %p55 = scmp.eq.s32.totalorder %s14, 0
      %p56 = por %p54, %p55
      %p57 = scmp.ne.s32.totalorder %s45, %s46
      %p58 = scmp.eq.s32.totalorder %s15, 1
      %p59 = por %p57, %p58
      %p61 = scmp.ne.s32.totalorder %s46, %s60
      %p62 = scmp.eq.s32.totalorder %s15, 0
      %p63 = por %p61, %p62
      %s64 = ssub.s32 %s9, %s16
      %p65 = scmp.eq.s32.totalorder %s64, 0
      %s67 = sadd.s32 %s66, 1
      %s68 = scalar_select %p65, %s66, %s67
      %p71 = pneg %p65
      %p72 = scmp.eq.s32.totalorder %s9, 1
      %p73 = por %p71, %p72
      %p74 = scmp.ne.s32.totalorder %s66, %s69
      %p75 = scmp.eq.s32.totalorder %s9, 0
      %p76 = por %p74, %p75
      %p77 = scmp.ne.s32.totalorder %s66, %s69
      %p78 = scmp.eq.s32.totalorder %s14, 1
      %p79 = por %p77, %p78
      %p80 = scmp.ne.s32.totalorder %s69, %s70
      %p81 = scmp.eq.s32.totalorder %s14, 0
      %p82 = por %p80, %p81
      %p83 = scmp.ne.s32.totalorder %s69, %s70
      %p84 = scmp.eq.s32.totalorder %s15, 1
      %p85 = por %p83, %p84
      %p87 = scmp.ne.s32.totalorder %s70, %s86
      %p88 = scmp.eq.s32.totalorder %s15, 0
      %p89 = por %p87, %p88
      %p90 = scmp.le.s32.totalorder 1, %s9
      %p91 = scmp.lt.s32.totalorder %s9, 3
      %p92 = pnand %p90, %p91
      %p93 = pneg %p92
      // Predicated region
      $region9: #{linear_forward.1} parent=5 // pred_check
        _
      $region10: #{linear_forward.1} parent=5 // pred_check_branch
        %95 = sbr.rel (%p92) target = $region12
      $region11: #{linear_forward.1} parent=5 // pred_region
        %s96 = ssub.s32 %s9, 1
        // Predicated region
        $region13: #{linear_forward.1} parent=11 // pred_check
          %p97 = pneg %p56
        $region14: #{linear_forward.1} parent=11 // pred_check_branch
          %99 = sbr.rel (%p97) target = $region16
        $region15: #{linear_forward.1} parent=11 // pred_region
          %s101 = ssub.s32 16, 16
          %102 = vsyncadd [#allocation4], %s101
          %s104 = sshll.u32 %s1, 4
          %s105 = int_to_ptr.vmem [resolvable:$true] %s104
          %107 = dma.vmem_to_smem %s105, 16, [#allocation3], [#allocation4]
        $region16: #{linear_forward.1} parent=11 // pred_fallthru
          _
      $region12: #{linear_forward.1} parent=5 // pred_fallthru
        _
      %p108 = scmp.lt.s32.totalorder %s9, 2
      // Predicated region
      $region17: #{linear_forward.1} parent=5 // pred_check
        %p109 = pneg %p108
      $region18: #{linear_forward.1} parent=5 // pred_check_branch
        %111 = sbr.rel (%p109) target = $region20
      $region19: #{linear_forward.1} parent=5 // pred_region
        // Predicated region
        $region21: #{linear_forward.1} parent=19 // pred_check
          %p112 = pneg %p29
        $region22: #{linear_forward.1} parent=19 // pred_check_branch
          %114 = sbr.rel (%p112) target = $region24
        $region23: #{linear_forward.1} parent=19 // pred_region
          %s115 = sand.u32 %s19, 1
          %s116 = sand.u32 %s19, 1
          %s117 = smul.addr %s116, 32
          %s118 = scalar_lea.vmem [#allocation2], %s117
          %s119 = smul.u32 2, %s9
          %s120 = smul.addr %s119, 8
          %s121 = scalar_lea.vmem %s0, %s120
          // Predicated region
          $region25: #{linear_forward.1} parent=23 // pred_check
            _
          $region26: #{linear_forward.1} parent=23 // pred_check_branch
            %123 = sbr.rel (0) target = $region28
          $region27: #{linear_forward.1} parent=23 // pred_region
            // Predicated region
            $region29: #{linear_forward.1} parent=27 // pred_check
              _
            $region30: #{linear_forward.1} parent=27 // pred_check_branch
              %125 = sbr.rel (0) target = $region32
            $region31: #{linear_forward.1} parent=27 // pred_region
              loop: start=0, step=1, limit=1
              $region33: #{linear_forward.1} parent=31 // loop_pre_header
                _
              $region34: #{linear_forward.1} parent=31 // loop_header
                %s127 = sphi 0, %s131
                %p128 = scmp.ge.s32.totalorder %s127, 1
                %s132 = sphi %s121, %s121
                %s133 = sphi %s118, %s118
              $region35: #{linear_forward.1} parent=31 // loop_header_branch
                %130 = sbr.rel (%p128) target = $region39
              $region36: #{linear_forward.1} parent=31 // loop_body
                %v134 = vld [vmem:[%s132] sm:$0xff]
                %135 = vst [vmem:[%s133] sm:$0xff] %v134
                %v136 = vld [vmem:[%s132 + $0x8] sm:$0xff]
                %137 = vst [vmem:[%s133 + $0x8] sm:$0xff] %v136
                %v138 = vld [vmem:[%s132 + $0x20] sm:$0xff]
                %139 = vst [vmem:[%s133 + $0x10] sm:$0xff] %v138
                %v140 = vld [vmem:[%s132 + $0x28] sm:$0xff]
                %141 = vst [vmem:[%s133 + $0x18] sm:$0xff] %v140
              $region37: #{linear_forward.1} parent=31 // loop_footer
                %s131 = sadd.s32 1, %s127
              $region38: #{linear_forward.1} parent=31 // loop_footer_branch
                %126 = sbr.rel target = $region34
              $region39: #{linear_forward.1} parent=31 // loop_exit
                _
            $region32: #{linear_forward.1} parent=27 // pred_fallthru
              _
            // Predicated region
            $region40: #{linear_forward.1} parent=27 // pred_check
              _
            $region41: #{linear_forward.1} parent=27 // pred_check_branch
              %143 = sbr.rel target = $region43
            $region42: #{linear_forward.1} parent=27 // pred_region
              _
            $region43: #{linear_forward.1} parent=27 // pred_fallthru
              _
          $region28: #{linear_forward.1} parent=23 // pred_fallthru
            _
          %144 = vnop
        $region24: #{linear_forward.1} parent=19 // pred_fallthru
          _
      $region20: #{linear_forward.1} parent=5 // pred_fallthru
        _
      %p145 = scmp.le.s32.totalorder 1, %s9
      %p146 = scmp.lt.s32.totalorder %s9, 3
      %p147 = pnand %p145, %p146
      %p148 = pneg %p147
      // Predicated region
      $region44: #{linear_forward.1} parent=5 // pred_check
        _
      $region45: #{linear_forward.1} parent=5 // pred_check_branch
        %150 = sbr.rel (%p147) target = $region47
      $region46: #{linear_forward.1} parent=5 // pred_region
        %s151 = ssub.s32 %s9, 1
        %s152 = sand.u32 %s22, 1
        %s153 = sand.u32 %s22, 1
        %s154 = smul.addr %s153, 32
        %s155 = scalar_lea.vmem [#allocation2], %s154
        // Predicated region
        $region48: #{linear_forward.1} parent=46 // pred_check
          %p156 = pneg %p35
        $region49: #{linear_forward.1} parent=46 // pred_check_branch
          %158 = sbr.rel (%p156) target = $region51
        $region50: #{linear_forward.1} parent=46 // pred_region
          _
        $region51: #{linear_forward.1} parent=46 // pred_fallthru
          _
        // Predicated region
        $region52: #{linear_forward.1} parent=46 // pred_check
          %p159 = pneg %p56
        $region53: #{linear_forward.1} parent=46 // pred_check_branch
          %161 = sbr.rel (%p159) target = $region55
        $region54: #{linear_forward.1} parent=46 // pred_region
          %162 = dma.done [#allocation4], 16
        $region55: #{linear_forward.1} parent=46 // pred_fallthru
          _
        %163 = sfence
        %s164 = sand.u32 %s22, 1
        %s165 = sand.u32 %s22, 1
        %s166 = smul.addr %s165, 32
        %s167 = scalar_lea.vmem [#allocation2], %s166
        %p168 = pneg %p35
        %p169 = pneg %p32
        %p170 = pneg %p56
        %p171 = pneg %p53
        %p172 = pneg %p82
        %p173 = pneg %p79
        %s174 = smul.u32 2, %s14
        %p175 = scmp.lt.s32.totalorder %s174, 3
        %s176 = scalar_select %p175, %s174, 3
        %s177 = smul.addr %s176, 8
        %s178 = scalar_lea.vmem %s2, %s177
        %s179 = smul.u32 2, %s14
        %s180 = smul.u32 2, %s14
        %p181 = scmp.lt.s32.totalorder %s180, 3
        %s182 = scalar_select %p181, %s180, 3
        %s183 = smul.addr %s182, 8
        %s184 = scalar_lea.vmem %s2, %s183
        %s185 = smul.u32 2, %s14
        %v186 = vld [vmem:[%s155] sm:$0xff]
        %v187 = vld [vmem:[%s155 + $0x8] sm:$0xff]
        %v188 = vld [vmem:[%s155 + $0x10] sm:$0xff]
        %v189 = vld [vmem:[%s155 + $0x18] sm:$0xff]
        %s190 = sld [smem:[#allocation3]]
        %v191 = vstv %s190
        %v192 = vmul.f32 %v186, %v191
        %v193 = vmul.f32 %v187, %v191
        %s194 = sld [smem:[#allocation3 + $0x1]]
        %v195 = vstv %s194
        %v196 = vmul.f32 %v188, %v195
        %v197 = vmul.f32 %v189, %v195
        %v198 = vadd.f32 %v192, %v196
        %v199 = vadd.f32 %v193, %v197
        %200 = vst [vmem:[%s184] sm:$0xff] %v198
        %201 = vst [vmem:[%s184 + $0x8] sm:$0xff] %v199
        %s202 = smul.u32 2, %s14
        %p203 = scmp.lt.s32.totalorder %s202, 3
        %s204 = scalar_select %p203, %s202, 3
        %s205 = smul.addr %s204, 8
        %s206 = scalar_lea.vmem %s2, %s205
        // Predicated region
        $region56: #{linear_forward.1} parent=46 // pred_check
          %p207 = pneg %p79
        $region57: #{linear_forward.1} parent=46 // pred_check_branch
          %209 = sbr.rel (%p207) target = $region59
        $region58: #{linear_forward.1} parent=46 // pred_region
          %s210 = smul.u32 2, %s14
        $region59: #{linear_forward.1} parent=46 // pred_fallthru
          _
      $region47: #{linear_forward.1} parent=5 // pred_fallthru
        _
      %p211 = scmp.le.s32.totalorder 2, %s9
      // Predicated region
      $region60: #{linear_forward.1} parent=5 // pred_check
        %p212 = pneg %p211
      $region61: #{linear_forward.1} parent=5 // pred_check_branch
        %214 = sbr.rel (%p212) target = $region63
      $region62: #{linear_forward.1} parent=5 // pred_region
        %s215 = ssub.s32 %s9, 2
        // Predicated region
        $region64: #{linear_forward.1} parent=62 // pred_check
          %p216 = pneg %p85
        $region65: #{linear_forward.1} parent=62 // pred_check_branch
          %218 = sbr.rel (%p216) target = $region67
        $region66: #{linear_forward.1} parent=62 // pred_region
          %s219 = smul.u32 2, %s15
          %p220 = scmp.lt.s32.totalorder %s219, 3
          %s221 = scalar_select %p220, %s219, 3
          %s222 = smul.addr %s221, 8
          %s223 = scalar_lea.vmem %s2, %s222
        $region67: #{linear_forward.1} parent=62 // pred_fallthru
          _
      $region63: #{linear_forward.1} parent=5 // pred_fallthru
        _
    $region6: #{linear_forward.1} parent=1 // loop_footer
      %s13 = sadd.s32 1, %s9
    $region7: #{linear_forward.1} parent=1 // loop_footer_branch
      %8 = sbr.rel target = $region3
    $region8: #{linear_forward.1} parent=1 // loop_exit
      _
    %224 = vsyncpa [#allocation4], 1
    %s225 = scalar_lea.sflag [#allocation4], 1
    %226 = vsyncpa %s225, 1

</llo_original>
